<compile_context>
chip_gen: v7x
topology: tpu7x:2x2x1
jax: 0.10.0
libtpu: 0.0.40
codegen_flags: <defaults>
</compile_context>

<pallas_src>
import functools

import jax
import jax.numpy as jnp
from jax.experimental import pallas as pl
from jax.experimental.pallas import tpu as pltpu

EPS = 0.001
_LOG10E = 0.4342944819032518  # 1 / ln(10)


def _sid_kernel(pred_ref, gt_ref, out_ref, rowpart_ref, acc_ref, *,
                rows, cols, tr, tc, blocks_per_part, mask_rows, mask_cols):
    """Grid = (partition, row_block, col_block); reduction axes are last.

    pred_ref, gt_ref : (tr, tc) tiles in VMEM (input dtype; cast to f32 here)
    out_ref          : (1, 1, 1) f32 per-partition partial sum
    rowpart_ref      : (tr, 1) f32 per-row spatial partial sum across col blocks
    acc_ref          : (tr, 1) f32 running sum of |row_sum| for this partition
    """
    pp = pl.program_id(0)
    rj = pl.program_id(1)
    cj = pl.program_id(2)
    last_rj = pl.num_programs(1) - 1
    last_cj = pl.num_programs(2) - 1

    @pl.when(jnp.logical_and(rj == 0, cj == 0))
    def _():
        acc_ref[...] = jnp.zeros_like(acc_ref)

    @pl.when(cj == 0)
    def _():
        rowpart_ref[...] = jnp.zeros_like(rowpart_ref)

    def _accumulate(apply_col_mask):
        # Clip in the input dtype (bounds 0/1 are exact in any float dtype, so
        # this is bit-identical to cast-then-clip), then cast to f32.
        out = jnp.clip(pred_ref[...], 0.0, 1.0).astype(jnp.float32)
        gt = gt_ref[...].astype(jnp.float32)
        # a1 + a2 == (out - gt) * log10((out+EPS)/(gt+EPS)).  Single log per
        # element; the 1/ln(10) factor is applied once on the final scalar.
        prod = (out - gt) * jnp.log((out + EPS) / (gt + EPS))
        if apply_col_mask:  # ragged column tail of the last column block
            col_ids = cj * tc + jax.lax.broadcasted_iota(jnp.int32, (1, tc), 1)
            prod = jnp.where(col_ids < cols, prod, 0.0)
        rowpart_ref[...] += jnp.sum(prod, axis=1, keepdims=True)

    if mask_cols:
        # Only the last (ragged) column block pays for the mask.
        @pl.when(cj == last_cj)
        def _():
            _accumulate(True)

        @pl.when(cj != last_cj)
        def _():
            _accumulate(False)
    else:
        _accumulate(False)

    @pl.when(cj == last_cj)
    def _():
        contrib = jnp.abs(rowpart_ref[...])
        if mask_rows:  # static flag: ragged row tail of the last row block
            row_start = (pp * blocks_per_part + rj) * tr
            row_ids = row_start + jax.lax.broadcasted_iota(jnp.int32, (tr, 1), 0)
            contrib = jnp.where(row_ids < rows, contrib, 0.0)
        acc_ref[...] += contrib

    @pl.when(jnp.logical_and(rj == last_rj, cj == last_cj))
    def _():
        out_ref[0] = jnp.sum(acc_ref[...], keepdims=True)


def sid_loss(tensor_pred, tensor_gt, *, target_block_elems=None):
    """Pallas TPU implementation of Loss_SID.forward (returns a scalar)."""
    assert tensor_pred.shape == tensor_gt.shape
    N, C, H, W = tensor_pred.shape
    rows, cols = N * C, H * W

    # No pad, no upcast: only a free reshape on the wrapper side.
    p = tensor_pred.reshape(rows, cols)
    g = tensor_gt.reshape(rows, cols)

    itemsize = int(jnp.dtype(tensor_pred.dtype).itemsize)

    # ---- generation-aware VMEM budget ----
    try:
        vmem_cap = int(pltpu.get_tpu_info().vmem_capacity_bytes)
    except Exception:
        vmem_cap = 64 * 1024 * 1024            # v7x-safe fallback
    if vmem_cap < 32 * 1024 * 1024:
        vmem_cap = 64 * 1024 * 1024
    vmem_limit = (vmem_cap * 3) // 4           # ~48 MiB v7x, ~96 MiB v5e/v6e

    if target_block_elems is None:
        # Per-tile INPUT byte budget: 2 inputs x 2 pipeline buffers resident,
        # plus headroom for f32 intermediates (more headroom for packed dtypes
        # since the working set widens in-kernel).
        tile_bytes = vmem_limit // (6 if itemsize >= 4 else 8)
        target_block_elems = max(8 * 128, tile_bytes // itemsize)

    # ---- tile selection (memory bound) ----
    if cols * 8 <= target_block_elems:
        tc = cols                                    # full spatial extent per block
    else:                                            # huge H*W: tile the lane axis
        tc = max(128, ((target_block_elems // 8) // 128) * 128)
        tc = min(tc, cols)                           # either mult-of-128 or full dim
    n_cb = pl.cdiv(cols, tc)

    tr = max(8, ((target_block_elems // tc) // 8) * 8)
    if rows <= tr:
        tr = rows                                    # single full-extent row block
    n_rb = pl.cdiv(rows, tr)

    # Prefer an even row-block count so the 2-way partition splits exactly
    # (no clamped duplicate blocks => no wasted DMA/compute on any chip).
    if n_rb > 1 and n_rb % 2 == 1:
        tr_try = ((pl.cdiv(rows, n_rb + 1) + 7) // 8) * 8
        if tr_try >= 8 and pl.cdiv(rows, tr_try) % 2 == 0:
            tr = tr_try
            n_rb = pl.cdiv(rows, tr)

    n_par = 2 if (n_rb >= 2 and n_rb % 2 == 0) else 1
    bpp = n_rb // n_par                              # row blocks per partition

    mask_rows = (n_rb * tr) != rows
    mask_cols = (n_cb * tc) != cols

    kernel = functools.partial(
        _sid_kernel, rows=rows, cols=cols, tr=tr, tc=tc,
        blocks_per_part=bpp, mask_rows=mask_rows, mask_cols=mask_cols)

    def in_map(pp, rj, cj):
        # Exact split (n_par * bpp == n_rb), so no clamp / duplicate blocks.
        return (pp * bpp + rj, cj)

    cost = pl.CostEstimate(
        flops=7 * rows * cols,
        transcendentals=2 * rows * cols,             # log + divide per element
        bytes_accessed=2 * rows * cols * itemsize + n_par * 4,
    )

    partials = pl.pallas_call(
        kernel,
        out_shape=jax.ShapeDtypeStruct((n_par, 1, 1), jnp.float32),
        grid_spec=pltpu.PrefetchScalarGridSpec(
            num_scalar_prefetch=0,
            grid=(n_par, bpp, n_cb),
            in_specs=[
                pl.BlockSpec((tr, tc), in_map),
                pl.BlockSpec((tr, tc), in_map),
            ],
            out_specs=pl.BlockSpec((1, 1, 1), lambda pp, rj, cj: (pp, 0, 0)),
            scratch_shapes=[
                pltpu.VMEM((tr, 1), jnp.float32),    # per-row spatial partial sum
                pltpu.VMEM((tr, 1), jnp.float32),    # running sum of |row_sum|
            ],
        ),
        compiler_params=pltpu.CompilerParams(
            dimension_semantics=("parallel", "arbitrary", "arbitrary"),
            vmem_limit_bytes=int(vmem_limit),
        ),
        cost_estimate=cost,
    )(p, g)

    # Mean over (N, C) plus the deferred 1/ln(10) factor (tiny JAX epilogue).
    sid = jnp.sum(partials) * (_LOG10E / rows)
    # TODO(synk): the PyTorch module raises ValueError when sid is NaN; there is
    # no in-kernel raise, so an equivalent host-side isnan check would have to
    # live outside jit.
    return sid


def _sid_ref(pred, gt):
    """Pure-JAX reference mirroring the PyTorch forward."""
    out = jnp.clip(pred, 0.0, 1.0)
    a1 = out * jnp.log10((out + EPS) / (gt + EPS))
    a2 = gt * jnp.log10((gt + EPS) / (out + EPS))
    a1_sum = a1.sum(axis=3).sum(axis=2)
    a2_sum = a2.sum(axis=3).sum(axis=2)
    return jnp.mean(jnp.abs(a1_sum + a2_sum))


if __name__ == "__main__":
    key = jax.random.PRNGKey(0)
    k1, k2, k3, k4 = jax.random.split(key, 4)

    # Case 1: small NCHW inputs (2, 4, 16, 16) — single-block fast path.
    pred = jax.random.uniform(k1, (2, 4, 16, 16), jnp.float32, -0.1, 1.1)
    gt = jax.random.uniform(k2, (2, 4, 16, 16), jnp.float32, 0.0, 1.0)
    sid = jax.block_until_ready(sid_loss(pred, gt))
    ref = _sid_ref(pred, gt)
    assert jnp.allclose(sid, ref, rtol=1e-4, atol=1e-5), (sid, ref)

    # Case 2: ragged shapes with tiny forced tiles — exercises row/column
    # masking (gated last-column-block mask), the two-partition split and
    # partial edge blocks.
    pred2 = jax.random.uniform(k3, (3, 3, 10, 20), jnp.float32, -0.1, 1.1)
    gt2 = jax.random.uniform(k4, (3, 3, 10, 20), jnp.float32, 0.0, 1.0)
    sid2 = jax.block_until_ready(sid_loss(pred2, gt2, target_block_elems=1024))
    ref2 = _sid_ref(pred2, gt2)
    assert jnp.allclose(sid2, ref2, rtol=1e-4, atol=1e-5), (sid2, ref2)

    print("KERNEL_OK")
</pallas_src>

<mosaic_0001>
module attributes {stable_mosaic.version = 11 : i64} {
  func.func @_sid_kernel(%arg0: i32, %arg1: i32, %arg2: i32, %arg3: memref<8x256xf32, #tpu.memory_space<vmem>>, %arg4: memref<8x256xf32, #tpu.memory_space<vmem>>, %arg5: memref<1x1x1xf32, #tpu.memory_space<vmem>>, %arg6: memref<8x1xf32, #tpu.memory_space<vmem>>, %arg7: memref<8x1xf32, #tpu.memory_space<vmem>>) attributes {dimension_semantics = [#tpu.dimension_semantics<parallel>, #tpu.dimension_semantics<arbitrary>, #tpu.dimension_semantics<arbitrary>], iteration_bounds = array<i64: 1, 1, 1>, scalar_prefetch = 0 : i64, scratch_operands = 2 : i64, tpu.core_type = #tpu.core_type<tc>, window_params = [{transform_indices = @transform_0, window_bounds = array<i64: 8, 256>}, {transform_indices = @transform_1, window_bounds = array<i64: 8, 256>}, {transform_indices = @transform_2, window_bounds = array<i64: 1, 1, 1>}]} {
    %c0_i32 = arith.constant 0 : i32
    %0 = arith.cmpi eq, %arg1, %c0_i32 : i32
    %c0_i32_0 = arith.constant 0 : i32
    %1 = arith.cmpi eq, %arg2, %c0_i32_0 : i32
    %2 = arith.andi %0, %1 : i1
    %3 = arith.extui %2 : i1 to i32
    %c0_i32_1 = arith.constant 0 : i32
    %4 = arith.cmpi ne, %3, %c0_i32_1 : i32
    scf.if %4 {
      %cst_20 = arith.constant 0.000000e+00 : f32
      %35 = vector.broadcast %cst_20 : f32 to vector<8x1xf32>
      %c0_21 = arith.constant 0 : index
      %c0_22 = arith.constant 0 : index
      %36 = vector.load %arg7[%c0_21, %c0_22] : memref<8x1xf32, #tpu.memory_space<vmem>>, vector<8x1xf32>
      tpu.vector_store %arg7[%c0_21, %c0_22], %35 {strides = array<i32>} : memref<8x1xf32, #tpu.memory_space<vmem>>, vector<8x1xf32>,
    } else {
    }
    %c0_i32_2 = arith.constant 0 : i32
    %5 = arith.cmpi eq, %arg2, %c0_i32_2 : i32
    %6 = arith.extui %5 : i1 to i32
    %c0_i32_3 = arith.constant 0 : i32
    %7 = arith.cmpi ne, %6, %c0_i32_3 : i32
    scf.if %7 {
      %cst_20 = arith.constant 0.000000e+00 : f32
      %35 = vector.broadcast %cst_20 : f32 to vector<8x1xf32>
      %c0_21 = arith.constant 0 : index
      %c0_22 = arith.constant 0 : index
      %36 = vector.load %arg6[%c0_21, %c0_22] : memref<8x1xf32, #tpu.memory_space<vmem>>, vector<8x1xf32>
      tpu.vector_store %arg6[%c0_21, %c0_22], %35 {strides = array<i32>} : memref<8x1xf32, #tpu.memory_space<vmem>>, vector<8x1xf32>,
    } else {
    }
    %c0 = arith.constant 0 : index
    %c0_4 = arith.constant 0 : index
    %8 = vector.load %arg3[%c0, %c0_4] : memref<8x256xf32, #tpu.memory_space<vmem>>, vector<8x256xf32>
    %cst = arith.constant 0.000000e+00 : f32
    %cst_5 = arith.constant 1.000000e+00 : f32
    %9 = vector.broadcast %cst : f32 to vector<8x256xf32>
    %10 = arith.maximumf %9, %8 : vector<8x256xf32>
    %11 = vector.broadcast %cst_5 : f32 to vector<8x256xf32>
    %12 = arith.minimumf %11, %10 : vector<8x256xf32>
    %c0_6 = arith.constant 0 : index
    %c0_7 = arith.constant 0 : index
    %13 = vector.load %arg4[%c0_6, %c0_7] : memref<8x256xf32, #tpu.memory_space<vmem>>, vector<8x256xf32>
    %14 = arith.subf %12, %13 : vector<8x256xf32>
    %cst_8 = arith.constant 1.000000e-03 : f32
    %15 = vector.broadcast %cst_8 : f32 to vector<8x256xf32>
    %16 = arith.addf %12, %15 : vector<8x256xf32>
    %cst_9 = arith.constant 1.000000e-03 : f32
    %17 = vector.broadcast %cst_9 : f32 to vector<8x256xf32>
    %18 = arith.addf %13, %17 : vector<8x256xf32>
    %19 = arith.divf %16, %18 : vector<8x256xf32>
    %20 = math.log %19 : vector<8x256xf32>
    %21 = arith.mulf %14, %20 : vector<8x256xf32>
    %c0_10 = arith.constant 0 : index
    %c0_11 = arith.constant 0 : index
    %22 = vector.load %arg6[%c0_10, %c0_11] : memref<8x1xf32, #tpu.memory_space<vmem>>, vector<8x1xf32>
    %cst_12 = arith.constant dense<0.000000e+00> : vector<8xf32>
    %23 = vector.multi_reduction <add>, %21, %cst_12 [1] : vector<8x256xf32> to vector<8xf32>
    %24 = vector.shape_cast %23 : vector<8xf32> to vector<8x1xf32>
    %25 = arith.addf %22, %24 : vector<8x1xf32>
    %c0_13 = arith.constant 0 : index
    %c0_14 = arith.constant 0 : index
    %26 = vector.load %arg6[%c0_13, %c0_14] : memref<8x1xf32, #tpu.memory_space<vmem>>, vector<8x1xf32>
    tpu.vector_store %arg6[%c0_13, %c0_14], %25 {strides = array<i32>} : memref<8x1xf32, #tpu.memory_space<vmem>>, vector<8x1xf32>,
    %c0_i32_15 = arith.constant 0 : i32
    %27 = arith.cmpi eq, %arg2, %c0_i32_15 : i32
    %28 = arith.extui %27 : i1 to i32
    %c0_i32_16 = arith.constant 0 : i32
    %29 = arith.cmpi ne, %28, %c0_i32_16 : i32
    scf.if %29 {
      %c0_20 = arith.constant 0 : index
      %c0_21 = arith.constant 0 : index
      %35 = vector.load %arg6[%c0_20, %c0_21] : memref<8x1xf32, #tpu.memory_space<vmem>>, vector<8x1xf32>
      %36 = math.absf %35 : vector<8x1xf32>
      %c0_22 = arith.constant 0 : index
      %c0_23 = arith.constant 0 : index
      %37 = vector.load %arg7[%c0_22, %c0_23] : memref<8x1xf32, #tpu.memory_space<vmem>>, vector<8x1xf32>
      %38 = arith.addf %37, %36 : vector<8x1xf32>
      %c0_24 = arith.constant 0 : index
      %c0_25 = arith.constant 0 : index
      %39 = vector.load %arg7[%c0_24, %c0_25] : memref<8x1xf32, #tpu.memory_space<vmem>>, vector<8x1xf32>
      tpu.vector_store %arg7[%c0_24, %c0_25], %38 {strides = array<i32>} : memref<8x1xf32, #tpu.memory_space<vmem>>, vector<8x1xf32>,
    } else {
    }
    %c0_i32_17 = arith.constant 0 : i32
    %30 = arith.cmpi eq, %arg1, %c0_i32_17 : i32
    %c0_i32_18 = arith.constant 0 : i32
    %31 = arith.cmpi eq, %arg2, %c0_i32_18 : i32
    %32 = arith.andi %30, %31 : i1
    %33 = arith.extui %32 : i1 to i32
    %c0_i32_19 = arith.constant 0 : i32
    %34 = arith.cmpi ne, %33, %c0_i32_19 : i32
    scf.if %34 {
      %c0_20 = arith.constant 0 : index
      %c0_21 = arith.constant 0 : index
      %35 = vector.load %arg7[%c0_20, %c0_21] : memref<8x1xf32, #tpu.memory_space<vmem>>, vector<8x1xf32>
      %36 = vector.shape_cast %35 : vector<8x1xf32> to vector<1x8x1xf32>
      %cst_22 = arith.constant dense<0.000000e+00> : vector<1xf32>
      %37 = vector.multi_reduction <add>, %36, %cst_22 [1, 2] : vector<1x8x1xf32> to vector<1xf32>
      %38 = vector.shape_cast %37 : vector<1xf32> to vector<1x1x1xf32>
      %39 = vector.extract %38[0, 0, 0] : f32 from vector<1x1x1xf32>
      %40 = vector.broadcast %39 : f32 to vector<1x1xf32>
      %c0_23 = arith.constant 0 : index
      %c0_24 = arith.constant 0 : index
      %c0_25 = arith.constant 0 : index
      %41 = vector.load %arg5[%c0_23, %c0_24, %c0_25] : memref<1x1x1xf32, #tpu.memory_space<vmem>>, vector<1x1x1xf32>
      %42 = vector.shape_cast %41 : vector<1x1x1xf32> to vector<1x1xf32>
      %43 = vector.shape_cast %40 : vector<1x1xf32> to vector<1x1x1xf32>
      tpu.vector_store %arg5[%c0_23, %c0_24, %c0_25], %43 {strides = array<i32>} : memref<1x1x1xf32, #tpu.memory_space<vmem>>, vector<1x1x1xf32>,
    } else {
    }
    return
  }
  func.func @transform_0(%arg0: i32, %arg1: i32, %arg2: i32) -> (i32, i32) {
    %c1_i32 = arith.constant 1 : i32
    %0 = arith.muli %arg0, %c1_i32 : i32
    %1 = arith.addi %0, %arg1 : i32
    %c0_i32 = arith.constant 0 : i32
    return %1, %arg2 : i32, i32
  }
  func.func @transform_1(%arg0: i32, %arg1: i32, %arg2: i32) -> (i32, i32) {
    %c1_i32 = arith.constant 1 : i32
    %0 = arith.muli %arg0, %c1_i32 : i32
    %1 = arith.addi %0, %arg1 : i32
    %c0_i32 = arith.constant 0 : i32
    return %1, %arg2 : i32, i32
  }
  func.func @transform_2(%arg0: i32, %arg1: i32, %arg2: i32) -> (i32, i32, i32) {
    %c0_i32 = arith.constant 0 : i32
    %c0_i32_0 = arith.constant 0 : i32
    %c0_i32_1 = arith.constant 0 : i32
    return %arg0, %c0_i32, %c0_i32_0 : i32, i32, i32
  }
}

</mosaic_0001>

<llo_original>
// kernel: tpu_custom_call.1
$region0: #{tpu_custom_call.1}
  #allocation0 [shape = 'u32[]', space=smem, size = 0x4, offset = 0x4, fixed_abs, tag = 'smem constant byte address 0x4 - core index']
  #allocation1 [shape = 'u32[144,128]{1,0:T(1,128)}', space=vmem, size = 0x12000, scoped, tag = 'internal scratch']
  #allocation2 [shape = 'f32[8,1]{1,0:T(8,128)}', space=vmem, size = 0x1000, scoped, tag = 'scratch operand']
  #allocation3 [shape = 'f32[8,1]{1,0:T(8,128)}', space=vmem, size = 0x1000, scoped, tag = 'scratch operand']
  %s0 = inlined_call_operand.hbm [shape: f32[8,256], index: 0, kind: input, shape index: {}]
  %s1 = inlined_call_operand.hbm [shape: f32[8,256], index: 1, kind: input, shape index: {}]
  %s2 = inlined_call_operand.hbm [shape: f32[1,1,1], index: 2, kind: output, shape index: {}]
  %s3 = sld [smem:[#allocation0]]
  $region42: #{tpu_custom_call.1} parent=0
    _
  %s5 = ssub.s32 1, %s3
  %s6 = scalar_select 0, %s5, %s3
  $region1: #{tpu_custom_call.1} parent=0
    #allocation4 [shape = 'u8[8192]{0}', space=vmem, size = 0x2000, scoped, tag = 'input window, operand 0, single buffered']
    #allocation5 [shape = 's32[1]{0}', space=sflag, size = 0x4, scoped, tag = 'scoped memory for tpu_custom_call.1']
    #allocation6 [shape = 's32[1]{0}', space=sflag, size = 0x4, scoped, tag = 'scoped memory for tpu_custom_call.1']
    #allocation7 [shape = 'u8[8192]{0}', space=vmem, size = 0x2000, scoped, tag = 'input window, operand 1, single buffered']
    #allocation8 [shape = 's32[1]{0}', space=sflag, size = 0x4, scoped, tag = 'scoped memory for tpu_custom_call.1']
    #allocation9 [shape = 'u8[512]{0}', space=vmem, size = 0x400, scoped, tag = 'output window, operand 0, single buffered']
    %7 = vsyncpa [#allocation5], 0
    %8 = vsyncpa [#allocation8], 0
    %9 = vsyncpa [#allocation6], 0
    // Predicated region
    $region2: #{tpu_custom_call.1} parent=1 // pred_check
      _
    $region3: #{tpu_custom_call.1} parent=1 // pred_check_branch
      %11 = sbr.rel (0) target = $region5
    $region4: #{tpu_custom_call.1} parent=1 // pred_region
      %s12 = sadd.s32 0, 0
      %s14 = ssub.s32 256, 256
      %15 = vsyncadd [#allocation5], %s14
      %s16 = smul.addr %s12, 2
      %s17 = smul.addr %s16, 128
      %s18 = scalar_lea.hbm %s0, %s17
      %s20 = sshll.u32 [#allocation4], 4
      %s21 = int_to_ptr.vmem [resolvable:$true] %s20
      %23 = dma.hbm_to_vmem [thread:$0]  %s18, 256, %s21, [#allocation5]
    $region5: #{tpu_custom_call.1} parent=1 // pred_fallthru
      _
    // Predicated region
    $region6: #{tpu_custom_call.1} parent=1 // pred_check
      _
    $region7: #{tpu_custom_call.1} parent=1 // pred_check_branch
      %25 = sbr.rel (0) target = $region9
    $region8: #{tpu_custom_call.1} parent=1 // pred_region
      %s26 = sadd.s32 0, 0
      %s28 = ssub.s32 256, 256
      %29 = vsyncadd [#allocation8], %s28
      %s30 = smul.addr %s26, 2
      %s31 = smul.addr %s30, 128
      %s32 = scalar_lea.hbm %s1, %s31
      %s34 = sshll.u32 [#allocation7], 4
      %s35 = int_to_ptr.vmem [resolvable:$true] %s34
      %37 = dma.hbm_to_vmem [thread:$0]  %s32, 256, %s35, [#allocation8]
    $region9: #{tpu_custom_call.1} parent=1 // pred_fallthru
      _
    // Predicated region
    $region10: #{tpu_custom_call.1} parent=1 // pred_check
      _
    $region11: #{tpu_custom_call.1} parent=1 // pred_check_branch
      %39 = sbr.rel (0) target = $region13
    $region12: #{tpu_custom_call.1} parent=1 // pred_region
      %40 = dma.done [#allocation5], 256
    $region13: #{tpu_custom_call.1} parent=1 // pred_fallthru
      _
    // Predicated region
    $region14: #{tpu_custom_call.1} parent=1 // pred_check
      _
    $region15: #{tpu_custom_call.1} parent=1 // pred_check_branch
      %42 = sbr.rel (0) target = $region17
    $region16: #{tpu_custom_call.1} parent=1 // pred_region
      %43 = dma.done [#allocation8], 256
    $region17: #{tpu_custom_call.1} parent=1 // pred_fallthru
      _
    %s44 = sadd.s32 0, 0
    %s45 = sadd.s32 0, 0
    %p46 = scmp.eq.s32.totalorder 0, 0
    %p47 = scmp.eq.s32.totalorder 0, 0
    %p48 = pnand %p46, %p47
    %p49 = pneg %p48
    // Predicated region
    $region18: #{tpu_custom_call.1} parent=1 // pred_check
      _
    $region19: #{tpu_custom_call.1} parent=1 // pred_check_branch
      %51 = sbr.rel (%p48) target = $region21
    $region20: #{tpu_custom_call.1} parent=1 // pred_region
      %vm52 = vcmask 7168
      %53 = vst.msk [vmem:[#allocation3] sm:$0xff] %vm52, 0.0
    $region21: #{tpu_custom_call.1} parent=1 // pred_fallthru
      _
    // Predicated region
    $region22: #{tpu_custom_call.1} parent=1 // pred_check
      %p54 = pneg %p47
    $region23: #{tpu_custom_call.1} parent=1 // pred_check_branch
      %56 = sbr.rel (%p54) target = $region25
    $region24: #{tpu_custom_call.1} parent=1 // pred_region
      %vm57 = vcmask 7168
      %58 = vst.msk [vmem:[#allocation2] sm:$0xff] %vm57, 0.0
    $region25: #{tpu_custom_call.1} parent=1 // pred_fallthru
      _
    %v59 = vld [vmem:[#allocation4] sm:$0xff]
    %v60 = vld [vmem:[#allocation4 + $0x8] sm:$0xff]
    %v61 = vmax.f32 %v59, 0.0
    %v62 = vmax.f32 %v60, 0.0
    %v63 = vmin.f32 %v61, 1.0
    %v64 = vmin.f32 %v62, 1.0
    %v65 = vld [vmem:[#allocation7] sm:$0xff]
    %v66 = vld [vmem:[#allocation7 + $0x8] sm:$0xff]
    %v67 = vsub.f32 %v63, %v65
    %v68 = vsub.f32 %v64, %v66
    %v69 = vadd.f32 %v63, 0.001
    %v70 = vadd.f32 %v64, 0.001
    %v71 = vadd.f32 %v65, 0.001
    %v72 = vadd.f32 %v66, 0.001
    %v73 = vrcp.pop %v71
    %v74 = vmul.f32 %v69, %v73
    %v75 = vrcp.pop %v72
    %v76 = vmul.f32 %v70, %v75
    %v77 = vlog2.pop %v74
    %v78 = vmul.f32 %v77, 0.6931472
    %v79 = vlog2.pop %v76
    %v80 = vmul.f32 %v79, 0.6931472
    %v81 = vmul.f32 %v67, %v78
    %v82 = vmul.f32 %v68, %v80
    %v83 = vld [vmem:[#allocation2] sm:$0xff]
    %v84 = vadd.f32 %v81, %v82
    %85 = vadd.xlane.f32.xlu0 %v84
    %v86 = vpop.xlane.xlu0 %85
    %v87 = vadd.f32 %v83, %v86
    %vm88 = vcmask 7168
    %89 = vst.msk [vmem:[#allocation2] sm:$0xff] %vm88, %v87
    // Predicated region
    $region26: #{tpu_custom_call.1} parent=1 // pred_check
      %p90 = pneg %p47
    $region27: #{tpu_custom_call.1} parent=1 // pred_check_branch
      %92 = sbr.rel (%p90) target = $region29
    $region28: #{tpu_custom_call.1} parent=1 // pred_region
      %v93 = vld [vmem:[#allocation2] sm:$0xff]
      %v94 = vand.u32 2147483647, %v93
      %v95 = vld [vmem:[#allocation3] sm:$0xff]
      %v96 = vadd.f32 %v95, %v94
      %97 = vst.msk [vmem:[#allocation3] sm:$0xff] %vm88, %v96
    $region29: #{tpu_custom_call.1} parent=1 // pred_fallthru
      _
    // Predicated region
    $region30: #{tpu_custom_call.1} parent=1 // pred_check
      _
    $region31: #{tpu_custom_call.1} parent=1 // pred_check_branch
      %99 = sbr.rel (%p48) target = $region33
    $region32: #{tpu_custom_call.1} parent=1 // pred_region
      %v100 = vld [vmem:[#allocation3] sm:$0xff]
      %v101 = vsel %vm88, %v100, 0.0
      %102 = vadd.xlane.f32.xlu0 %v101
      %v103 = vpop.xlane.xlu0 %102
      %v104 = vrot.slane %v103, 4
      %v105 = vadd.f32 %v103, %v104
      %v106 = vrot.slane %v105, 2
      %v107 = vadd.f32 %v105, %v106
      %v108 = vrot.slane %v107, 1
      %v109 = vadd.f32 %v107, %v108
      %s110 = vtos %v109
      %v111 = vstv %s110
      %vm112 = vcmask 0
      %113 = vst.msk [vmem:[#allocation9] sm:$0x1] %vm112, %v111
    $region33: #{tpu_custom_call.1} parent=1 // pred_fallthru
      _
    // Predicated region
    $region34: #{tpu_custom_call.1} parent=1 // pred_check
      _
    $region35: #{tpu_custom_call.1} parent=1 // pred_check_branch
      %115 = sbr.rel (0) target = $region37
    $region36: #{tpu_custom_call.1} parent=1 // pred_region
      %s117 = ssub.s32 16, 16
      %118 = vsyncadd [#allocation6], %s117
      %s120 = sshll.u32 [#allocation9], 4
      %s121 = int_to_ptr.vmem [resolvable:$true] %s120
      %123 = dma.vmem_to_hbm [thread:$0]  %s121, 16, %s2, [#allocation6]
    $region37: #{tpu_custom_call.1} parent=1 // pred_fallthru
      _
    // Predicated region
    $region38: #{tpu_custom_call.1} parent=1 // pred_check
      _
    $region39: #{tpu_custom_call.1} parent=1 // pred_check_branch
      %125 = sbr.rel (0) target = $region41
    $region40: #{tpu_custom_call.1} parent=1 // pred_region
      %126 = dma.done [#allocation6], 16
    $region41: #{tpu_custom_call.1} parent=1 // pred_fallthru
      _
    %127 = vsyncpa [#allocation5], 1
    %128 = vsyncpa [#allocation8], 1
    %129 = vsyncpa [#allocation6], 1

</llo_original>
